<compile_context>
chip_gen: v7x
topology: tpu7x:2x2x1
jax: 0.10.0
libtpu: 0.0.40
codegen_flags: <defaults>
</compile_context>

<pallas_src>
import functools

import jax
import jax.numpy as jnp
from jax.experimental import pallas as pl
from jax.experimental.pallas import tpu as pltpu


_POOL_CHUNK = 128  # pooled output columns produced per selection matmul


# --------------------------------------------------------------------------
# Shared per-element Conv1d helper (no bias; K accumulated tap matmuls)
# --------------------------------------------------------------------------
def _conv1d_nobias(x_cl, w_ref, *, K, L_out):
    """Valid Conv1d (stride 1, no bias) for one batch element.

    x_cl  : (C_in, L) value in matmul dtype (L on lanes)
    w_ref : (K, C_out, C_in) ref in matmul dtype (tap-major)
    returns (C_out, L_out) f32
    """
    acc = jnp.dot(w_ref[0], x_cl[:, 0:L_out], preferred_element_type=jnp.float32)
    for k in range(1, K):
        acc = acc + jnp.dot(w_ref[k], x_cl[:, k:k + L_out],
                            preferred_element_type=jnp.float32)
    return acc


# --------------------------------------------------------------------------
# O(L) AvgPool(2) along lanes: chunked banded selection matmul (MXU slack)
# --------------------------------------------------------------------------
def _pool_selection_matrix(n_out):
    """(2*n_out, n_out) matrix P with P[2j, j] = P[2j+1, j] = 0.5."""
    n_in = 2 * n_out
    r = jax.lax.broadcasted_iota(jnp.int32, (n_in, n_out), 0)
    c = jax.lax.broadcasted_iota(jnp.int32, (n_in, n_out), 1)
    return jnp.where((r == 2 * c) | (r == 2 * c + 1),
                     jnp.float32(0.5), jnp.float32(0.0))


def _make_pool_fn(L_pool):
    """pool(z): (C, >=2*L_pool) f32 -> (C, L_pool) f32, out[:,j]=0.5*(z[:,2j]+z[:,2j+1]).

    Applied in <=128-wide output chunks: O(C * L * 128) MACs (linear in L),
    tiny constant matrices (built once per kernel invocation, hoisted out of
    the per-batch loop), lane-dense, no strided lane gathers.
    """
    plan = []
    j = 0
    while j < L_pool:
        w = min(_POOL_CHUNK, L_pool - j)
        plan.append((j, w))
        j += w
    widths = sorted({w for _, w in plan})
    sel = {w: _pool_selection_matrix(w) for w in widths}

    def pool(z):
        parts = [jnp.dot(z[:, 2 * jj:2 * (jj + ww)], sel[ww],
                         preferred_element_type=jnp.float32)
                 for jj, ww in plan]
        return parts[0] if len(parts) == 1 else jnp.concatenate(parts, axis=1)

    return pool


# --------------------------------------------------------------------------
# Pass 1: conv + per-batch-element BatchNorm partials (two-pass mean/M2)
# --------------------------------------------------------------------------
def _conv_stats_kernel(x_ref, w_ref, sum_ref, m2_ref, *, K, L_out, B_tile):
    inv_n = jnp.float32(1.0 / L_out)
    for b in range(B_tile):
        y = _conv1d_nobias(x_ref[b], w_ref, K=K, L_out=L_out)   # (C_out, L_out) f32
        s = jnp.sum(y, axis=1, keepdims=True)                    # (C_out, 1)
        d = y - s * inv_n                                         # centered (two-pass)
        sum_ref[b] = s
        m2_ref[b] = jnp.sum(d * d, axis=1, keepdims=True)


# --------------------------------------------------------------------------
# Pass 2: conv (recomputed) + fused BN affine + ELU + O(L) AvgPool(2)
# --------------------------------------------------------------------------
def _bn_elu_pool_kernel(x_ref, w_ref, scale_ref, shift_ref, out_ref, *,
                        K, L_out, L_pool, add_avg_pool, B_tile):
    pool = _make_pool_fn(L_pool) if add_avg_pool else None       # hoisted
    for b in range(B_tile):
        y = _conv1d_nobias(x_ref[b], w_ref, K=K, L_out=L_out)     # f32
        z = y * scale_ref[...] + shift_ref[...]                    # fused BN affine
        z = jnp.where(z > 0, z, jnp.expm1(jnp.minimum(z, 0.0)))    # ELU, no overflow
        out_ref[b] = pool(z) if add_avg_pool else z


# --------------------------------------------------------------------------
# Wrapper
# --------------------------------------------------------------------------
def _vmem_limit_bytes():
    cap = None
    try:
        cap = int(pltpu.get_tpu_info().vmem_capacity_bytes)
    except Exception:
        cap = None
    if not cap or cap <= 0:
        cap = 64 * 1024 * 1024            # conservative fallback (v7x-sized)
    return int(min(cap * 3 // 4, 100 * 1024 * 1024))


def _pick_batch_tile(N, C_in, L, itemsize, budget_bytes=4 * 1024 * 1024):
    for cand in (8, 4, 2):
        if N % cand == 0 and cand * C_in * L * itemsize <= budget_bytes:
            return cand
    return 1


def conv_block(x_ncl, weight, bias, gamma, beta, *, eps=1e-5,
               add_avg_pool=True, matmul_dtype=jnp.bfloat16):
    """x_ncl: (N, C_in, L); weight: (C_out, C_in, K) (PyTorch Conv1d layout)."""
    del bias  # provably cancelled by the batch-stats BatchNorm affine
    N, C_in, L = x_ncl.shape
    C_out, _, K = weight.shape
    L_out = L - K + 1
    L_pool = L_out // 2 if add_avg_pool else L_out

    # x is the dominant HBM stream, read by both passes: DMA it in matmul dtype.
    x = x_ncl.astype(matmul_dtype)
    # Conv1d weight (C_out, C_in, K) -> (K, C_out, C_in): w[k] is the k-th tap.
    w_kco = jnp.transpose(weight, (2, 0, 1)).astype(matmul_dtype)

    B_tile = _pick_batch_tile(N, C_in, L, jnp.dtype(matmul_dtype).itemsize)
    NB = N // B_tile

    cparams = pltpu.CompilerParams(
        dimension_semantics=("parallel",),
        vmem_limit_bytes=_vmem_limit_bytes(),
    )

    x_spec = pl.BlockSpec((B_tile, C_in, L), lambda n: (n, 0, 0))
    w_spec = pl.BlockSpec((K, C_out, C_in), lambda n: (0, 0, 0))
    v_spec = pl.BlockSpec((C_out, 1), lambda n: (0, 0))
    s_spec = pl.BlockSpec((B_tile, C_out, 1), lambda n: (n, 0, 0))

    # ---- Pass 1: per-batch-element conv sum + M2 ----
    stats_kernel = functools.partial(_conv_stats_kernel, K=K, L_out=L_out,
                                     B_tile=B_tile)
    part_sum, part_m2 = pl.pallas_call(
        stats_kernel,
        grid=(NB,),
        in_specs=[x_spec, w_spec],
        out_specs=[s_spec, s_spec],
        out_shape=(jax.ShapeDtypeStruct((N, C_out, 1), jnp.float32),
                   jax.ShapeDtypeStruct((N, C_out, 1), jnp.float32)),
        compiler_params=cparams,
    )(x, w_kco)

    # ---- Finalize BN stats (tiny per-channel XLA, Chan parallel variance) ----
    n_l = jnp.float32(L_out)
    cnt = jnp.float32(N * L_out)
    sum_e = part_sum[:, :, 0]                         # (N, C_out)
    m2_e = part_m2[:, :, 0]                           # (N, C_out)
    mean_e = sum_e / n_l
    mean = jnp.sum(sum_e, axis=0) / cnt               # (C_out,) bias-free conv mean
    m2 = jnp.sum(m2_e, axis=0) + n_l * jnp.sum((mean_e - mean[None, :]) ** 2, axis=0)
    var = jnp.maximum(m2 / cnt, 0.0)                  # biased, as BatchNorm uses
    scale = gamma.astype(jnp.float32) * jax.lax.rsqrt(var + eps)
    shift = beta.astype(jnp.float32) - mean * scale   # conv bias cancels exactly
    scale2 = scale.reshape(C_out, 1)
    shift2 = shift.reshape(C_out, 1)

    # ---- Pass 2: conv + BN + ELU + pool ----
    apply_kernel = functools.partial(
        _bn_elu_pool_kernel, K=K, L_out=L_out, L_pool=L_pool,
        add_avg_pool=add_avg_pool, B_tile=B_tile)
    out = pl.pallas_call(
        apply_kernel,
        grid=(NB,),
        in_specs=[x_spec, w_spec, v_spec, v_spec],
        out_specs=pl.BlockSpec((B_tile, C_out, L_pool), lambda n: (n, 0, 0)),
        out_shape=jax.ShapeDtypeStruct((N, C_out, L_pool), jnp.float32),
        compiler_params=cparams,
    )(x, w_kco, scale2, shift2)
    return out


# --------------------------------------------------------------------------
# Pure-JAX reference mirroring the PyTorch forward (training-mode BN)
# --------------------------------------------------------------------------
def conv_block_reference(x, weight, bias, gamma, beta, *, eps=1e-5, add_avg_pool=True):
    N, C_in, L = x.shape
    C_out, _, K = weight.shape
    L_out = L - K + 1
    patches = jnp.stack([x[:, :, k:k + L_out] for k in range(K)], axis=-1)  # (N,Ci,Lo,K)
    y = jnp.einsum('nilk,oik->nol', patches, weight) + bias[None, :, None]
    mean = jnp.mean(y, axis=(0, 2), keepdims=True)
    var = jnp.mean((y - mean) ** 2, axis=(0, 2), keepdims=True)   # biased
    y = (y - mean) * jax.lax.rsqrt(var + eps)
    y = y * gamma[None, :, None] + beta[None, :, None]
    y = jnp.where(y > 0, y, jnp.expm1(y))
    if add_avg_pool:
        L_pool = L_out // 2
        y = y[:, :, :2 * L_pool].reshape(N, C_out, L_pool, 2).mean(axis=-1)
    return y


if __name__ == "__main__":
    N, C_in, C_out, K, L = 2, 4, 8, 3, 16

    key = jax.random.PRNGKey(0)
    kx, kw, kb = jax.random.split(key, 3)
    x = jax.random.normal(kx, (N, C_in, L), dtype=jnp.float32)
    weight = jax.random.normal(kw, (C_out, C_in, K), dtype=jnp.float32) * 0.2
    bias = jax.random.normal(kb, (C_out,), dtype=jnp.float32) * 0.1
    gamma = jnp.ones((C_out,), dtype=jnp.float32)   # BatchNorm1d default init
    beta = jnp.zeros((C_out,), dtype=jnp.float32)

    ref = conv_block_reference(x, weight, bias, gamma, beta, add_avg_pool=True)
    L_pool = (L - K + 1) // 2

    # Exact path (f32 matmul operands): tight check against the reference.
    out_f32 = jax.block_until_ready(
        conv_block(x, weight, bias, gamma, beta, add_avg_pool=True,
                   matmul_dtype=jnp.float32))
    assert out_f32.shape == (N, C_out, L_pool), out_f32.shape
    err32 = jnp.max(jnp.abs(out_f32 - ref))
    assert jnp.allclose(out_f32, ref, atol=1e-4, rtol=1e-4), \
        f"f32 max abs err {err32}"

    # Production path (bf16 x/w DMA, f32 accumulate / BN / ELU): looser check.
    out_bf16 = jax.block_until_ready(
        conv_block(x, weight, bias, gamma, beta, add_avg_pool=True,
                   matmul_dtype=jnp.bfloat16))
    assert out_bf16.shape == (N, C_out, L_pool), out_bf16.shape
    errbf = jnp.max(jnp.abs(out_bf16 - ref))
    assert jnp.allclose(out_bf16, ref, atol=5e-2, rtol=5e-2), \
        f"bf16 max abs err {errbf}"

    print("KERNEL_OK")
</pallas_src>

<mosaic_0001>
module attributes {stable_mosaic.version = 11 : i64} {
  func.func @_conv_stats_kernel(%arg0: i32, %arg1: memref<2x4x16xf32, #tpu.memory_space<vmem>>, %arg2: memref<3x8x4xf32, #tpu.memory_space<vmem>>, %arg3: memref<2x8x1xf32, #tpu.memory_space<vmem>>, %arg4: memref<2x8x1xf32, #tpu.memory_space<vmem>>) attributes {dimension_semantics = [#tpu.dimension_semantics<parallel>], iteration_bounds = array<i64: 1>, scalar_prefetch = 0 : i64, scratch_operands = 0 : i64, tpu.core_type = #tpu.core_type<tc>, window_params = [{transform_indices = @transform_0, window_bounds = array<i64: 2, 4, 16>}, {pipeline_mode = #tpu.pipeline_mode<synchronous>, transform_indices = @transform_1, window_bounds = array<i64: 3, 8, 4>}, {transform_indices = @transform_2, window_bounds = array<i64: 2, 8, 1>}, {transform_indices = @transform_3, window_bounds = array<i64: 2, 8, 1>}]} {
    %c0 = arith.constant 0 : index
    %c0_0 = arith.constant 0 : index
    %c0_1 = arith.constant 0 : index
    %0 = vector.load %arg1[%c0, %c0_0, %c0_1] : memref<2x4x16xf32, #tpu.memory_space<vmem>>, vector<1x4x16xf32>
    %1 = vector.shape_cast %0 : vector<1x4x16xf32> to vector<4x16xf32>
    %c0_2 = arith.constant 0 : index
    %c0_3 = arith.constant 0 : index
    %c0_4 = arith.constant 0 : index
    %2 = vector.load %arg2[%c0_2, %c0_3, %c0_4] : memref<3x8x4xf32, #tpu.memory_space<vmem>>, vector<1x8x4xf32>
    %3 = vector.shape_cast %2 : vector<1x8x4xf32> to vector<8x4xf32>
    %4 = vector.extract_strided_slice %1 {offsets = [0, 0], sizes = [4, 14], strides = [1, 1]} : vector<4x16xf32> to vector<4x14xf32>
    %cst = arith.constant dense<0.000000e+00> : vector<8x14xf32>
    %5 = tpu.matmul %3, %4, %cst {dimension_numbers = #tpu.dot_dimension_numbers<[1], [0], [0], [1], [0, 0, 1, 1], [], []>} : vector<8x4xf32>, vector<4x14xf32>, vector<8x14xf32> -> vector<8x14xf32>
    %c1 = arith.constant 1 : index
    %c0_5 = arith.constant 0 : index
    %c0_6 = arith.constant 0 : index
    %6 = vector.load %arg2[%c1, %c0_5, %c0_6] : memref<3x8x4xf32, #tpu.memory_space<vmem>>, vector<1x8x4xf32>
    %7 = vector.shape_cast %6 : vector<1x8x4xf32> to vector<8x4xf32>
    %8 = vector.extract_strided_slice %1 {offsets = [0, 1], sizes = [4, 14], strides = [1, 1]} : vector<4x16xf32> to vector<4x14xf32>
    %cst_7 = arith.constant dense<0.000000e+00> : vector<8x14xf32>
    %9 = tpu.matmul %7, %8, %cst_7 {dimension_numbers = #tpu.dot_dimension_numbers<[1], [0], [0], [1], [0, 0, 1, 1], [], []>} : vector<8x4xf32>, vector<4x14xf32>, vector<8x14xf32> -> vector<8x14xf32>
    %10 = arith.addf %5, %9 : vector<8x14xf32>
    %c2 = arith.constant 2 : index
    %c0_8 = arith.constant 0 : index
    %c0_9 = arith.constant 0 : index
    %11 = vector.load %arg2[%c2, %c0_8, %c0_9] : memref<3x8x4xf32, #tpu.memory_space<vmem>>, vector<1x8x4xf32>
    %12 = vector.shape_cast %11 : vector<1x8x4xf32> to vector<8x4xf32>
    %13 = vector.extract_strided_slice %1 {offsets = [0, 2], sizes = [4, 14], strides = [1, 1]} : vector<4x16xf32> to vector<4x14xf32>
    %cst_10 = arith.constant dense<0.000000e+00> : vector<8x14xf32>
    %14 = tpu.matmul %12, %13, %cst_10 {dimension_numbers = #tpu.dot_dimension_numbers<[1], [0], [0], [1], [0, 0, 1, 1], [], []>} : vector<8x4xf32>, vector<4x14xf32>, vector<8x14xf32> -> vector<8x14xf32>
    %15 = arith.addf %10, %14 : vector<8x14xf32>
    %cst_11 = arith.constant dense<0.000000e+00> : vector<8xf32>
    %16 = vector.multi_reduction <add>, %15, %cst_11 [1] : vector<8x14xf32> to vector<8xf32>
    %17 = vector.shape_cast %16 : vector<8xf32> to vector<8x1xf32>
    %cst_12 = arith.constant 0.0714285746 : f32
    %18 = vector.broadcast %cst_12 : f32 to vector<8x1xf32>
    %19 = arith.mulf %17, %18 : vector<8x1xf32>
    %20 = vector.broadcast %19 : vector<8x1xf32> to vector<8x14xf32>
    %21 = arith.subf %15, %20 : vector<8x14xf32>
    %c0_13 = arith.constant 0 : index
    %c0_14 = arith.constant 0 : index
    %c0_15 = arith.constant 0 : index
    %22 = vector.load %arg3[%c0_13, %c0_14, %c0_15] : memref<2x8x1xf32, #tpu.memory_space<vmem>>, vector<1x8x1xf32>
    %23 = vector.shape_cast %22 : vector<1x8x1xf32> to vector<8x1xf32>
    %24 = vector.shape_cast %17 : vector<8x1xf32> to vector<1x8x1xf32>
    tpu.vector_store %arg3[%c0_13, %c0_14, %c0_15], %24 {strides = array<i32>} : memref<2x8x1xf32, #tpu.memory_space<vmem>>, vector<1x8x1xf32>,
    %25 = arith.mulf %21, %21 : vector<8x14xf32>
    %cst_16 = arith.constant dense<0.000000e+00> : vector<8xf32>
    %26 = vector.multi_reduction <add>, %25, %cst_16 [1] : vector<8x14xf32> to vector<8xf32>
    %27 = vector.shape_cast %26 : vector<8xf32> to vector<8x1xf32>
    %c0_17 = arith.constant 0 : index
    %c0_18 = arith.constant 0 : index
    %c0_19 = arith.constant 0 : index
    %28 = vector.load %arg4[%c0_17, %c0_18, %c0_19] : memref<2x8x1xf32, #tpu.memory_space<vmem>>, vector<1x8x1xf32>
    %29 = vector.shape_cast %28 : vector<1x8x1xf32> to vector<8x1xf32>
    %30 = vector.shape_cast %27 : vector<8x1xf32> to vector<1x8x1xf32>
    tpu.vector_store %arg4[%c0_17, %c0_18, %c0_19], %30 {strides = array<i32>} : memref<2x8x1xf32, #tpu.memory_space<vmem>>, vector<1x8x1xf32>,
    %c1_20 = arith.constant 1 : index
    %c0_21 = arith.constant 0 : index
    %c0_22 = arith.constant 0 : index
    %31 = vector.load %arg1[%c1_20, %c0_21, %c0_22] : memref<2x4x16xf32, #tpu.memory_space<vmem>>, vector<1x4x16xf32>
    %32 = vector.shape_cast %31 : vector<1x4x16xf32> to vector<4x16xf32>
    %c0_23 = arith.constant 0 : index
    %c0_24 = arith.constant 0 : index
    %c0_25 = arith.constant 0 : index
    %33 = vector.load %arg2[%c0_23, %c0_24, %c0_25] : memref<3x8x4xf32, #tpu.memory_space<vmem>>, vector<1x8x4xf32>
    %34 = vector.shape_cast %33 : vector<1x8x4xf32> to vector<8x4xf32>
    %35 = vector.extract_strided_slice %32 {offsets = [0, 0], sizes = [4, 14], strides = [1, 1]} : vector<4x16xf32> to vector<4x14xf32>
    %cst_26 = arith.constant dense<0.000000e+00> : vector<8x14xf32>
    %36 = tpu.matmul %34, %35, %cst_26 {dimension_numbers = #tpu.dot_dimension_numbers<[1], [0], [0], [1], [0, 0, 1, 1], [], []>} : vector<8x4xf32>, vector<4x14xf32>, vector<8x14xf32> -> vector<8x14xf32>
    %c1_27 = arith.constant 1 : index
    %c0_28 = arith.constant 0 : index
    %c0_29 = arith.constant 0 : index
    %37 = vector.load %arg2[%c1_27, %c0_28, %c0_29] : memref<3x8x4xf32, #tpu.memory_space<vmem>>, vector<1x8x4xf32>
    %38 = vector.shape_cast %37 : vector<1x8x4xf32> to vector<8x4xf32>
    %39 = vector.extract_strided_slice %32 {offsets = [0, 1], sizes = [4, 14], strides = [1, 1]} : vector<4x16xf32> to vector<4x14xf32>
    %cst_30 = arith.constant dense<0.000000e+00> : vector<8x14xf32>
    %40 = tpu.matmul %38, %39, %cst_30 {dimension_numbers = #tpu.dot_dimension_numbers<[1], [0], [0], [1], [0, 0, 1, 1], [], []>} : vector<8x4xf32>, vector<4x14xf32>, vector<8x14xf32> -> vector<8x14xf32>
    %41 = arith.addf %36, %40 : vector<8x14xf32>
    %c2_31 = arith.constant 2 : index
    %c0_32 = arith.constant 0 : index
    %c0_33 = arith.constant 0 : index
    %42 = vector.load %arg2[%c2_31, %c0_32, %c0_33] : memref<3x8x4xf32, #tpu.memory_space<vmem>>, vector<1x8x4xf32>
    %43 = vector.shape_cast %42 : vector<1x8x4xf32> to vector<8x4xf32>
    %44 = vector.extract_strided_slice %32 {offsets = [0, 2], sizes = [4, 14], strides = [1, 1]} : vector<4x16xf32> to vector<4x14xf32>
    %cst_34 = arith.constant dense<0.000000e+00> : vector<8x14xf32>
    %45 = tpu.matmul %43, %44, %cst_34 {dimension_numbers = #tpu.dot_dimension_numbers<[1], [0], [0], [1], [0, 0, 1, 1], [], []>} : vector<8x4xf32>, vector<4x14xf32>, vector<8x14xf32> -> vector<8x14xf32>
    %46 = arith.addf %41, %45 : vector<8x14xf32>
    %cst_35 = arith.constant dense<0.000000e+00> : vector<8xf32>
    %47 = vector.multi_reduction <add>, %46, %cst_35 [1] : vector<8x14xf32> to vector<8xf32>
    %48 = vector.shape_cast %47 : vector<8xf32> to vector<8x1xf32>
    %cst_36 = arith.constant 0.0714285746 : f32
    %49 = vector.broadcast %cst_36 : f32 to vector<8x1xf32>
    %50 = arith.mulf %48, %49 : vector<8x1xf32>
    %51 = vector.broadcast %50 : vector<8x1xf32> to vector<8x14xf32>
    %52 = arith.subf %46, %51 : vector<8x14xf32>
    %c1_37 = arith.constant 1 : index
    %c0_38 = arith.constant 0 : index
    %c0_39 = arith.constant 0 : index
    %53 = vector.load %arg3[%c1_37, %c0_38, %c0_39] : memref<2x8x1xf32, #tpu.memory_space<vmem>>, vector<1x8x1xf32>
    %54 = vector.shape_cast %53 : vector<1x8x1xf32> to vector<8x1xf32>
    %55 = vector.shape_cast %48 : vector<8x1xf32> to vector<1x8x1xf32>
    tpu.vector_store %arg3[%c1_37, %c0_38, %c0_39], %55 {strides = array<i32>} : memref<2x8x1xf32, #tpu.memory_space<vmem>>, vector<1x8x1xf32>,
    %56 = arith.mulf %52, %52 : vector<8x14xf32>
    %cst_40 = arith.constant dense<0.000000e+00> : vector<8xf32>
    %57 = vector.multi_reduction <add>, %56, %cst_40 [1] : vector<8x14xf32> to vector<8xf32>
    %58 = vector.shape_cast %57 : vector<8xf32> to vector<8x1xf32>
    %c1_41 = arith.constant 1 : index
    %c0_42 = arith.constant 0 : index
    %c0_43 = arith.constant 0 : index
    %59 = vector.load %arg4[%c1_41, %c0_42, %c0_43] : memref<2x8x1xf32, #tpu.memory_space<vmem>>, vector<1x8x1xf32>
    %60 = vector.shape_cast %59 : vector<1x8x1xf32> to vector<8x1xf32>
    %61 = vector.shape_cast %58 : vector<8x1xf32> to vector<1x8x1xf32>
    tpu.vector_store %arg4[%c1_41, %c0_42, %c0_43], %61 {strides = array<i32>} : memref<2x8x1xf32, #tpu.memory_space<vmem>>, vector<1x8x1xf32>,
    return
  }
  func.func @transform_0(%arg0: i32) -> (i32, i32, i32) {
    %c0_i32 = arith.constant 0 : i32
    %c0_i32_0 = arith.constant 0 : i32
    %c0_i32_1 = arith.constant 0 : i32
    return %arg0, %c0_i32, %c0_i32_0 : i32, i32, i32
  }
  func.func @transform_1(%arg0: i32) -> (i32, i32, i32) {
    %c0_i32 = arith.constant 0 : i32
    %c0_i32_0 = arith.constant 0 : i32
    %c0_i32_1 = arith.constant 0 : i32
    %c0_i32_2 = arith.constant 0 : i32
    return %c0_i32, %c0_i32_0, %c0_i32_1 : i32, i32, i32
  }
  func.func @transform_2(%arg0: i32) -> (i32, i32, i32) {
    %c0_i32 = arith.constant 0 : i32
    %c0_i32_0 = arith.constant 0 : i32
    %c0_i32_1 = arith.constant 0 : i32
    return %arg0, %c0_i32, %c0_i32_0 : i32, i32, i32
  }
  func.func @transform_3(%arg0: i32) -> (i32, i32, i32) {
    %c0_i32 = arith.constant 0 : i32
    %c0_i32_0 = arith.constant 0 : i32
    %c0_i32_1 = arith.constant 0 : i32
    return %arg0, %c0_i32, %c0_i32_0 : i32, i32, i32
  }
}

</mosaic_0001>

<llo_original>
// kernel: tpu_custom_call.1
$region0: #{tpu_custom_call.1}
  #allocation0 [shape = 'u32[]', space=smem, size = 0x4, offset = 0x4, fixed_abs, tag = 'smem constant byte address 0x4 - core index']
  #allocation1 [shape = 'u32[144,128]{1,0:T(1,128)}', space=vmem, size = 0x12000, scoped, tag = 'internal scratch']
  %s0 = inlined_call_operand.vmem [shape: f32[2,4,16], index: 0, kind: input, shape index: {}]
  %s1 = inlined_call_operand.vmem [shape: f32[3,8,4], index: 1, kind: input, shape index: {}]
  %s2 = inlined_call_operand.vmem [shape: f32[2,8,1], index: 2, kind: output, shape index: {0}]
  %s3 = inlined_call_operand.vmem [shape: f32[2,8,1], index: 3, kind: output, shape index: {1}]
  %4 = xla_tuple %s2, %s3
  %s5 = sld [smem:[#allocation0]]
  $region26: #{tpu_custom_call.1} parent=0
    _
  %s7 = ssub.s32 1, %s5
  %s8 = scalar_select 0, %s7, %s5
  // Predicated region
  $region2: #{tpu_custom_call.1} parent=0 // pred_check
    _
  $region3: #{tpu_custom_call.1} parent=0 // pred_check_branch
    %10 = sbr.rel (0) target = $region5
  $region4: #{tpu_custom_call.1} parent=0 // pred_region
    _
  $region5: #{tpu_custom_call.1} parent=0 // pred_fallthru
    _
  // Predicated region
  $region6: #{tpu_custom_call.1} parent=0 // pred_check
    _
  $region7: #{tpu_custom_call.1} parent=0 // pred_check_branch
    %12 = sbr.rel (0) target = $region9
  $region8: #{tpu_custom_call.1} parent=0 // pred_region
    _
  $region9: #{tpu_custom_call.1} parent=0 // pred_fallthru
    _
  %v13 = vld [vmem:[%s0] sm:$0xf]
  %v14 = vld [vmem:[%s1] sm:$0xff]
  %s15 = scalar_lea.vmem %s1, 8
  %v16 = vld [vmem:[%s15] sm:$0xff]
  %18 = vrot.lane.b32.xlu0 %v13, 127
  %v19 = vpop.permute.xlu0 %18
  %vm20 = vcmask 31744
  %v22 = vsel %vm20, %v16, 0
  %vm24 = vcmask 1043456
  %v25 = vsel %vm24, %v19, 0
  %27 = vmatprep.subr.mxu0 0.0
  %28 = vmatpush1.msra.mxu0 %v25
  %29 = vmatprep.subr.mxu0 0.0
  %30 = vmatpush1.msra.mxu0 0.0
  %31 = vmatprep.subr.mxu0 0.0
  %32 = vmatpush1.msra.mxu0 0.0
  %33 = vmatprep.subr.mxu0 0.0
  %34 = vmatpush1.msra.mxu0 0.0
  %35 = vmatprep.subr.mxu0 0.0
  %36 = vmatpush1.msra.mxu0 0.0
  %37 = vmatprep.subr.mxu0 0.0
  %38 = vmatpush1.msra.mxu0 0.0
  %39 = vmatprep.subr.mxu0 0.0
  %40 = vmatpush1.msra.mxu0 0.0
  %41 = vmatprep.subr.mxu0 0.0
  %42 = vmatpush1.msra.mxu0 0.0
  %43 = vmatprep.subr.mxu0 0.0
  %44 = vmatpush1.msra.mxu0 0.0
  %45 = vmatprep.subr.mxu0 0.0
  %46 = vmatpush1.msra.mxu0 0.0
  %47 = vmatprep.subr.mxu0 0.0
  %48 = vmatpush1.msra.mxu0 0.0
  %49 = vmatprep.subr.mxu0 0.0
  %50 = vmatpush1.msra.mxu0 0.0
  %51 = vmatprep.subr.mxu0 0.0
  %52 = vmatpush1.msra.mxu0 0.0
  %53 = vmatprep.subr.mxu0 0.0
  %54 = vmatpush1.msra.mxu0 0.0
  %55 = vmatprep.subr.mxu0 0.0
  %56 = vmatpush1.msra.mxu0 0.0
  %57 = vmatprep.subr.mxu0 0.0
  %58 = vmatpush1.msra.mxu0 0.0
  %59 = vmatprep.subr.mxu0 0.0
  %60 = vmatpush1.msra.mxu0 0.0
  %61 = vmatprep.subr.mxu0 0.0
  %62 = vmatpush1.msra.mxu0 0.0
  %63 = vmatprep.subr.mxu0 0.0
  %64 = vmatpush1.msra.mxu0 0.0
  %65 = vmatprep.subr.mxu0 0.0
  %66 = vmatpush1.msra.mxu0 0.0
  %67 = vmatprep.subr.mxu0 0.0
  %68 = vmatpush1.msra.mxu0 0.0
  %69 = vmatprep.subr.mxu0 0.0
  %70 = vmatpush1.msra.mxu0 0.0
  %71 = vmatprep.subr.mxu0 0.0
  %72 = vmatpush1.msra.mxu0 0.0
  %73 = vmatprep.subr.mxu0 0.0
  %74 = vmatpush1.msra.mxu0 0.0
  %75 = vmatprep.subr.mxu0 0.0
  %76 = vmatpush1.msra.mxu0 0.0
  %77 = vmatprep.subr.mxu0 0.0
  %78 = vmatpush1.msra.mxu0 0.0
  %79 = vmatprep.subr.mxu0 0.0
  %80 = vmatpush1.msra.mxu0 0.0
  %81 = vmatprep.subr.mxu0 0.0
  %82 = vmatpush1.msra.mxu0 0.0
  %83 = vmatprep.subr.mxu0 0.0
  %84 = vmatpush1.msra.mxu0 0.0
  %85 = vmatprep.subr.mxu0 0.0
  %86 = vmatpush1.msra.mxu0 0.0
  %87 = vmatprep.subr.mxu0 0.0
  %88 = vmatpush1.msra.mxu0 0.0
  %89 = vmatprep.subr.mxu0 0.0
  %90 = vmatpush1.msra.mxu0 0.0
  %91 = vmatprep.mubr.f32.mxu0 0.0
  %92 = vmatmul.mubr.f32.gmra.mrb[0].mxu0 %v22
  %v93 = vpop.f32.mrb[0].mxu0
  %v94 = vadd.f32 0.0, %v93
  %v95 = vpop.f32.mrb[0].mxu0
  %96 = vdwg.mxu0
  %v98 = vsel %vm20, %v14, 0
  %v100 = vsel %vm24, %v13, 0
  %102 = vmatprep.subr.mxu0 0.0
  %103 = vmatpush1.msra.mxu0 %v100
  %104 = vmatprep.subr.mxu0 0.0
  %105 = vmatpush1.msra.mxu0 0.0
  %106 = vmatprep.subr.mxu0 0.0
  %107 = vmatpush1.msra.mxu0 0.0
  %108 = vmatprep.subr.mxu0 0.0
  %109 = vmatpush1.msra.mxu0 0.0
  %110 = vmatprep.subr.mxu0 0.0
  %111 = vmatpush1.msra.mxu0 0.0
  %112 = vmatprep.subr.mxu0 0.0
  %113 = vmatpush1.msra.mxu0 0.0
  %114 = vmatprep.subr.mxu0 0.0
  %115 = vmatpush1.msra.mxu0 0.0
  %116 = vmatprep.subr.mxu0 0.0
  %117 = vmatpush1.msra.mxu0 0.0
  %118 = vmatprep.subr.mxu0 0.0
  %119 = vmatpush1.msra.mxu0 0.0
  %120 = vmatprep.subr.mxu0 0.0
  %121 = vmatpush1.msra.mxu0 0.0
  %122 = vmatprep.subr.mxu0 0.0
  %123 = vmatpush1.msra.mxu0 0.0
  %124 = vmatprep.subr.mxu0 0.0
  %125 = vmatpush1.msra.mxu0 0.0
  %126 = vmatprep.subr.mxu0 0.0
  %127 = vmatpush1.msra.mxu0 0.0
  %128 = vmatprep.subr.mxu0 0.0
  %129 = vmatpush1.msra.mxu0 0.0
  %130 = vmatprep.subr.mxu0 0.0
  %131 = vmatpush1.msra.mxu0 0.0
  %132 = vmatprep.subr.mxu0 0.0
  %133 = vmatpush1.msra.mxu0 0.0
  %134 = vmatprep.subr.mxu0 0.0
  %135 = vmatpush1.msra.mxu0 0.0
  %136 = vmatprep.subr.mxu0 0.0
  %137 = vmatpush1.msra.mxu0 0.0
  %138 = vmatprep.subr.mxu0 0.0
  %139 = vmatpush1.msra.mxu0 0.0
  %140 = vmatprep.subr.mxu0 0.0
  %141 = vmatpush1.msra.mxu0 0.0
  %142 = vmatprep.subr.mxu0 0.0
  %143 = vmatpush1.msra.mxu0 0.0
  %144 = vmatprep.subr.mxu0 0.0
  %145 = vmatpush1.msra.mxu0 0.0
  %146 = vmatprep.subr.mxu0 0.0
  %147 = vmatpush1.msra.mxu0 0.0
  %148 = vmatprep.subr.mxu0 0.0
  %149 = vmatpush1.msra.mxu0 0.0
  %150 = vmatprep.subr.mxu0 0.0
  %151 = vmatpush1.msra.mxu0 0.0
  %152 = vmatprep.subr.mxu0 0.0
  %153 = vmatpush1.msra.mxu0 0.0
  %154 = vmatprep.subr.mxu0 0.0
  %155 = vmatpush1.msra.mxu0 0.0
  %156 = vmatprep.subr.mxu0 0.0
  %157 = vmatpush1.msra.mxu0 0.0
  %158 = vmatprep.subr.mxu0 0.0
  %159 = vmatpush1.msra.mxu0 0.0
  %160 = vmatprep.subr.mxu0 0.0
  %161 = vmatpush1.msra.mxu0 0.0
  %162 = vmatprep.subr.mxu0 0.0
  %163 = vmatpush1.msra.mxu0 0.0
  %164 = vmatprep.subr.mxu0 0.0
  %165 = vmatpush1.msra.mxu0 0.0
  %166 = vmatprep.mubr.f32.mxu0 0.0
  %167 = vmatmul.mubr.f32.gmra.mrb[0].mxu0 %v98
  %v168 = vpop.f32.mrb[0].mxu0
  %v169 = vadd.f32 %v94, %v168
  %v170 = vpop.f32.mrb[0].mxu0
  %171 = vdwg.mxu0
  %s172 = scalar_lea.vmem %s1, 16
  %v173 = vld [vmem:[%s172] sm:$0xff]
  %174 = vrot.lane.b32.xlu0 %v13, 126
  %v175 = vpop.permute.xlu0 %174
  %v177 = vsel %vm20, %v173, 0
  %v179 = vsel %vm24, %v175, 0
  %181 = vmatprep.subr.mxu0 0.0
  %182 = vmatpush1.msra.mxu0 %v179
  %183 = vmatprep.subr.mxu0 0.0
  %184 = vmatpush1.msra.mxu0 0.0
  %185 = vmatprep.subr.mxu0 0.0
  %186 = vmatpush1.msra.mxu0 0.0
  %187 = vmatprep.subr.mxu0 0.0
  %188 = vmatpush1.msra.mxu0 0.0
  %189 = vmatprep.subr.mxu0 0.0
  %190 = vmatpush1.msra.mxu0 0.0
  %191 = vmatprep.subr.mxu0 0.0
  %192 = vmatpush1.msra.mxu0 0.0
  %193 = vmatprep.subr.mxu0 0.0
  %194 = vmatpush1.msra.mxu0 0.0
  %195 = vmatprep.subr.mxu0 0.0
  %196 = vmatpush1.msra.mxu0 0.0
  %197 = vmatprep.subr.mxu0 0.0
  %198 = vmatpush1.msra.mxu0 0.0
  %199 = vmatprep.subr.mxu0 0.0
  %200 = vmatpush1.msra.mxu0 0.0
  %201 = vmatprep.subr.mxu0 0.0
  %202 = vmatpush1.msra.mxu0 0.0
  %203 = vmatprep.subr.mxu0 0.0
  %204 = vmatpush1.msra.mxu0 0.0
  %205 = vmatprep.subr.mxu0 0.0
  %206 = vmatpush1.msra.mxu0 0.0
  %207 = vmatprep.subr.mxu0 0.0
  %208 = vmatpush1.msra.mxu0 0.0
  %209 = vmatprep.subr.mxu0 0.0
  %210 = vmatpush1.msra.mxu0 0.0
  %211 = vmatprep.subr.mxu0 0.0
  %212 = vmatpush1.msra.mxu0 0.0
  %213 = vmatprep.subr.mxu0 0.0
  %214 = vmatpush1.msra.mxu0 0.0
  %215 = vmatprep.subr.mxu0 0.0
  %216 = vmatpush1.msra.mxu0 0.0
  %217 = vmatprep.subr.mxu0 0.0
  %218 = vmatpush1.msra.mxu0 0.0
  %219 = vmatprep.subr.mxu0 0.0
  %220 = vmatpush1.msra.mxu0 0.0
  %221 = vmatprep.subr.mxu0 0.0
  %222 = vmatpush1.msra.mxu0 0.0
  %223 = vmatprep.subr.mxu0 0.0
  %224 = vmatpush1.msra.mxu0 0.0
  %225 = vmatprep.subr.mxu0 0.0
  %226 = vmatpush1.msra.mxu0 0.0
  %227 = vmatprep.subr.mxu0 0.0
  %228 = vmatpush1.msra.mxu0 0.0
  %229 = vmatprep.subr.mxu0 0.0
  %230 = vmatpush1.msra.mxu0 0.0
  %231 = vmatprep.subr.mxu0 0.0
  %232 = vmatpush1.msra.mxu0 0.0
  %233 = vmatprep.subr.mxu0 0.0
  %234 = vmatpush1.msra.mxu0 0.0
  %235 = vmatprep.subr.mxu0 0.0
  %236 = vmatpush1.msra.mxu0 0.0
  %237 = vmatprep.subr.mxu0 0.0
  %238 = vmatpush1.msra.mxu0 0.0
  %239 = vmatprep.subr.mxu0 0.0
  %240 = vmatpush1.msra.mxu0 0.0
  %241 = vmatprep.subr.mxu0 0.0
  %242 = vmatpush1.msra.mxu0 0.0
  %243 = vmatprep.subr.mxu0 0.0
  %244 = vmatpush1.msra.mxu0 0.0
  %245 = vmatprep.mubr.f32.mxu0 0.0
  %246 = vmatmul.mubr.f32.gmra.mrb[0].mxu0 %v177
  %v247 = vpop.f32.mrb[0].mxu0
  %v248 = vadd.f32 0.0, %v247
  %v249 = vpop.f32.mrb[0].mxu0
  %250 = vdwg.mxu0
  %v251 = vadd.f32 %v169, %v248
  %vm252 = vcmask 113664
  %v253 = vsel %vm252, %v251, 0.0
  %254 = vadd.xlane.f32.xlu0 %v253
  %v255 = vpop.xlane.xlu0 %254
  %v256 = vmul.f32 %v255, 0.071428575
  %v257 = vsub.f32 %v251, %v256
  %vm258 = vcmask 7168
  %259 = vst.msk [vmem:[%s2] sm:$0xff] %vm258, %v255
  %v260 = vmul.f32 %v257, %v257
  %v261 = vsel %vm252, %v260, 0.0
  %262 = vadd.xlane.f32.xlu0 %v261
  %v263 = vpop.xlane.xlu0 %262
  %264 = vst.msk [vmem:[%s3] sm:$0xff] %vm258, %v263
  %s265 = scalar_lea.vmem %s0, 4
  %v266 = vld [vmem:[%s265] sm:$0xf]
  %v267 = vld [vmem:[%s1] sm:$0xff]
  %v268 = vld [vmem:[%s15] sm:$0xff]
  %270 = vrot.lane.b32.xlu0 %v266, 127
  %v271 = vpop.permute.xlu0 %270
  %v273 = vsel %vm20, %v268, 0
  %v275 = vsel %vm24, %v271, 0
  %277 = vmatprep.subr.mxu0 0.0
  %278 = vmatpush1.msra.mxu0 %v275
  %279 = vmatprep.subr.mxu0 0.0
  %280 = vmatpush1.msra.mxu0 0.0
  %281 = vmatprep.subr.mxu0 0.0
  %282 = vmatpush1.msra.mxu0 0.0
  %283 = vmatprep.subr.mxu0 0.0
  %284 = vmatpush1.msra.mxu0 0.0
  %285 = vmatprep.subr.mxu0 0.0
  %286 = vmatpush1.msra.mxu0 0.0
  %287 = vmatprep.subr.mxu0 0.0
  %288 = vmatpush1.msra.mxu0 0.0
  %289 = vmatprep.subr.mxu0 0.0
  %290 = vmatpush1.msra.mxu0 0.0
  %291 = vmatprep.subr.mxu0 0.0
  %292 = vmatpush1.msra.mxu0 0.0
  %293 = vmatprep.subr.mxu0 0.0
  %294 = vmatpush1.msra.mxu0 0.0
  %295 = vmatprep.subr.mxu0 0.0
  %296 = vmatpush1.msra.mxu0 0.0
  %297 = vmatprep.subr.mxu0 0.0
  %298 = vmatpush1.msra.mxu0 0.0
  %299 = vmatprep.subr.mxu0 0.0
  %300 = vmatpush1.msra.mxu0 0.0
  %301 = vmatprep.subr.mxu0 0.0
  %302 = vmatpush1.msra.mxu0 0.0
  %303 = vmatprep.subr.mxu0 0.0
  %304 = vmatpush1.msra.mxu0 0.0
  %305 = vmatprep.subr.mxu0 0.0
  %306 = vmatpush1.msra.mxu0 0.0
  %307 = vmatprep.subr.mxu0 0.0
  %308 = vmatpush1.msra.mxu0 0.0
  %309 = vmatprep.subr.mxu0 0.0
  %310 = vmatpush1.msra.mxu0 0.0
  %311 = vmatprep.subr.mxu0 0.0
  %312 = vmatpush1.msra.mxu0 0.0
  %313 = vmatprep.subr.mxu0 0.0
  %314 = vmatpush1.msra.mxu0 0.0
  %315 = vmatprep.subr.mxu0 0.0
  %316 = vmatpush1.msra.mxu0 0.0
  %317 = vmatprep.subr.mxu0 0.0
  %318 = vmatpush1.msra.mxu0 0.0
  %319 = vmatprep.subr.mxu0 0.0
  %320 = vmatpush1.msra.mxu0 0.0
  %321 = vmatprep.subr.mxu0 0.0
  %322 = vmatpush1.msra.mxu0 0.0
  %323 = vmatprep.subr.mxu0 0.0
  %324 = vmatpush1.msra.mxu0 0.0
  %325 = vmatprep.subr.mxu0 0.0
  %326 = vmatpush1.msra.mxu0 0.0
  %327 = vmatprep.subr.mxu0 0.0
  %328 = vmatpush1.msra.mxu0 0.0
  %329 = vmatprep.subr.mxu0 0.0
  %330 = vmatpush1.msra.mxu0 0.0
  %331 = vmatprep.subr.mxu0 0.0
  %332 = vmatpush1.msra.mxu0 0.0
  %333 = vmatprep.subr.mxu0 0.0
  %334 = vmatpush1.msra.mxu0 0.0
  %335 = vmatprep.subr.mxu0 0.0
  %336 = vmatpush1.msra.mxu0 0.0
  %337 = vmatprep.subr.mxu0 0.0
  %338 = vmatpush1.msra.mxu0 0.0
  %339 = vmatprep.subr.mxu0 0.0
  %340 = vmatpush1.msra.mxu0 0.0
  %341 = vmatprep.mubr.f32.mxu0 0.0
  %342 = vmatmul.mubr.f32.gmra.mrb[0].mxu0 %v273
  %v343 = vpop.f32.mrb[0].mxu0
  %v344 = vadd.f32 0.0, %v343
  %v345 = vpop.f32.mrb[0].mxu0
  %346 = vdwg.mxu0
  %v348 = vsel %vm20, %v267, 0
  %v350 = vsel %vm24, %v266, 0
  %352 = vmatprep.subr.mxu0 0.0
  %353 = vmatpush1.msra.mxu0 %v350
  %354 = vmatprep.subr.mxu0 0.0
  %355 = vmatpush1.msra.mxu0 0.0
  %356 = vmatprep.subr.mxu0 0.0
  %357 = vmatpush1.msra.mxu0 0.0
  %358 = vmatprep.subr.mxu0 0.0
  %359 = vmatpush1.msra.mxu0 0.0
  %360 = vmatprep.subr.mxu0 0.0
  %361 = vmatpush1.msra.mxu0 0.0
  %362 = vmatprep.subr.mxu0 0.0
  %363 = vmatpush1.msra.mxu0 0.0
  %364 = vmatprep.subr.mxu0 0.0
  %365 = vmatpush1.msra.mxu0 0.0
  %366 = vmatprep.subr.mxu0 0.0
  %367 = vmatpush1.msra.mxu0 0.0
  %368 = vmatprep.subr.mxu0 0.0
  %369 = vmatpush1.msra.mxu0 0.0
  %370 = vmatprep.subr.mxu0 0.0
  %371 = vmatpush1.msra.mxu0 0.0
  %372 = vmatprep.subr.mxu0 0.0
  %373 = vmatpush1.msra.mxu0 0.0
  %374 = vmatprep.subr.mxu0 0.0
  %375 = vmatpush1.msra.mxu0 0.0
  %376 = vmatprep.subr.mxu0 0.0
  %377 = vmatpush1.msra.mxu0 0.0
  %378 = vmatprep.subr.mxu0 0.0
  %379 = vmatpush1.msra.mxu0 0.0
  %380 = vmatprep.subr.mxu0 0.0
  %381 = vmatpush1.msra.mxu0 0.0
  %382 = vmatprep.subr.mxu0 0.0
  %383 = vmatpush1.msra.mxu0 0.0
  %384 = vmatprep.subr.mxu0 0.0
  %385 = vmatpush1.msra.mxu0 0.0
  %386 = vmatprep.subr.mxu0 0.0
  %387 = vmatpush1.msra.mxu0 0.0
  %388 = vmatprep.subr.mxu0 0.0
  %389 = vmatpush1.msra.mxu0 0.0
  %390 = vmatprep.subr.mxu0 0.0
  %391 = vmatpush1.msra.mxu0 0.0
  %392 = vmatprep.subr.mxu0 0.0
  %393 = vmatpush1.msra.mxu0 0.0
  %394 = vmatprep.subr.mxu0 0.0
  %395 = vmatpush1.msra.mxu0 0.0
  %396 = vmatprep.subr.mxu0 0.0
  %397 = vmatpush1.msra.mxu0 0.0
  %398 = vmatprep.subr.mxu0 0.0
  %399 = vmatpush1.msra.mxu0 0.0
  %400 = vmatprep.subr.mxu0 0.0
  %401 = vmatpush1.msra.mxu0 0.0
  %402 = vmatprep.subr.mxu0 0.0
  %403 = vmatpush1.msra.mxu0 0.0
  %404 = vmatprep.subr.mxu0 0.0
  %405 = vmatpush1.msra.mxu0 0.0
  %406 = vmatprep.subr.mxu0 0.0
  %407 = vmatpush1.msra.mxu0 0.0
  %408 = vmatprep.subr.mxu0 0.0
  %409 = vmatpush1.msra.mxu0 0.0
  %410 = vmatprep.subr.mxu0 0.0
  %411 = vmatpush1.msra.mxu0 0.0
  %412 = vmatprep.subr.mxu0 0.0
  %413 = vmatpush1.msra.mxu0 0.0
  %414 = vmatprep.subr.mxu0 0.0
  %415 = vmatpush1.msra.mxu0 0.0
  %416 = vmatprep.mubr.f32.mxu0 0.0
  %417 = vmatmul.mubr.f32.gmra.mrb[0].mxu0 %v348
  %v418 = vpop.f32.mrb[0].mxu0
  %v419 = vadd.f32 %v344, %v418
  %v420 = vpop.f32.mrb[0].mxu0
  %421 = vdwg.mxu0
  %v422 = vld [vmem:[%s172] sm:$0xff]
  %423 = vrot.lane.b32.xlu0 %v266, 126
  %v424 = vpop.permute.xlu0 %423
  %v426 = vsel %vm20, %v422, 0
  %v428 = vsel %vm24, %v424, 0
  %430 = vmatprep.subr.mxu0 0.0
  %431 = vmatpush1.msra.mxu0 %v428
  %432 = vmatprep.subr.mxu0 0.0
  %433 = vmatpush1.msra.mxu0 0.0
  %434 = vmatprep.subr.mxu0 0.0
  %435 = vmatpush1.msra.mxu0 0.0
  %436 = vmatprep.subr.mxu0 0.0
  %437 = vmatpush1.msra.mxu0 0.0
  %438 = vmatprep.subr.mxu0 0.0
  %439 = vmatpush1.msra.mxu0 0.0
  %440 = vmatprep.subr.mxu0 0.0
  %441 = vmatpush1.msra.mxu0 0.0
  %442 = vmatprep.subr.mxu0 0.0
  %443 = vmatpush1.msra.mxu0 0.0
  %444 = vmatprep.subr.mxu0 0.0
  %445 = vmatpush1.msra.mxu0 0.0
  %446 = vmatprep.subr.mxu0 0.0
  %447 = vmatpush1.msra.mxu0 0.0
  %448 = vmatprep.subr.mxu0 0.0
  %449 = vmatpush1.msra.mxu0 0.0
  %450 = vmatprep.subr.mxu0 0.0
  %451 = vmatpush1.msra.mxu0 0.0
  %452 = vmatprep.subr.mxu0 0.0
  %453 = vmatpush1.msra.mxu0 0.0
  %454 = vmatprep.subr.mxu0 0.0
  %455 = vmatpush1.msra.mxu0 0.0
  %456 = vmatprep.subr.mxu0 0.0
  %457 = vmatpush1.msra.mxu0 0.0
  %458 = vmatprep.subr.mxu0 0.0
  %459 = vmatpush1.msra.mxu0 0.0
  %460 = vmatprep.subr.mxu0 0.0
  %461 = vmatpush1.msra.mxu0 0.0
  %462 = vmatprep.subr.mxu0 0.0
  %463 = vmatpush1.msra.mxu0 0.0
  %464 = vmatprep.subr.mxu0 0.0
  %465 = vmatpush1.msra.mxu0 0.0
  %466 = vmatprep.subr.mxu0 0.0
  %467 = vmatpush1.msra.mxu0 0.0
  %468 = vmatprep.subr.mxu0 0.0
  %469 = vmatpush1.msra.mxu0 0.0
  %470 = vmatprep.subr.mxu0 0.0
  %471 = vmatpush1.msra.mxu0 0.0
  %472 = vmatprep.subr.mxu0 0.0
  %473 = vmatpush1.msra.mxu0 0.0
  %474 = vmatprep.subr.mxu0 0.0
  %475 = vmatpush1.msra.mxu0 0.0
  %476 = vmatprep.subr.mxu0 0.0
  %477 = vmatpush1.msra.mxu0 0.0
  %478 = vmatprep.subr.mxu0 0.0
  %479 = vmatpush1.msra.mxu0 0.0
  %480 = vmatprep.subr.mxu0 0.0
  %481 = vmatpush1.msra.mxu0 0.0
  %482 = vmatprep.subr.mxu0 0.0
  %483 = vmatpush1.msra.mxu0 0.0
  %484 = vmatprep.subr.mxu0 0.0
  %485 = vmatpush1.msra.mxu0 0.0
  %486 = vmatprep.subr.mxu0 0.0
  %487 = vmatpush1.msra.mxu0 0.0
  %488 = vmatprep.subr.mxu0 0.0
  %489 = vmatpush1.msra.mxu0 0.0
  %490 = vmatprep.subr.mxu0 0.0
  %491 = vmatpush1.msra.mxu0 0.0
  %492 = vmatprep.subr.mxu0 0.0
  %493 = vmatpush1.msra.mxu0 0.0
  %494 = vmatprep.mubr.f32.mxu0 0.0
  %495 = vmatmul.mubr.f32.gmra.mrb[0].mxu0 %v426
  %v496 = vpop.f32.mrb[0].mxu0
  %v497 = vadd.f32 0.0, %v496
  %v498 = vpop.f32.mrb[0].mxu0
  %499 = vdwg.mxu0
  %v500 = vadd.f32 %v419, %v497
  %v501 = vsel %vm252, %v500, 0.0
  %502 = vadd.xlane.f32.xlu0 %v501
  %v503 = vpop.xlane.xlu0 %502
  %v504 = vmul.f32 %v503, 0.071428575
  %v505 = vsub.f32 %v500, %v504
  %s506 = scalar_lea.vmem %s2, 8
  %507 = vst.msk [vmem:[%s506] sm:$0xff] %vm258, %v503
  %v508 = vmul.f32 %v505, %v505
  %v509 = vsel %vm252, %v508, 0.0
  %510 = vadd.xlane.f32.xlu0 %v509
  %v511 = vpop.xlane.xlu0 %510
  %s512 = scalar_lea.vmem %s3, 8
  %513 = vst.msk [vmem:[%s512] sm:$0xff] %vm258, %v511
  // Predicated region
  $region10: #{tpu_custom_call.1} parent=0 // pred_check
    _
  $region11: #{tpu_custom_call.1} parent=0 // pred_check_branch
    %515 = sbr.rel (0) target = $region13
  $region12: #{tpu_custom_call.1} parent=0 // pred_region
    _
  $region13: #{tpu_custom_call.1} parent=0 // pred_fallthru
    _
  // Predicated region
  $region14: #{tpu_custom_call.1} parent=0 // pred_check
    _
  $region15: #{tpu_custom_call.1} parent=0 // pred_check_branch
    %517 = sbr.rel (0) target = $region17
  $region16: #{tpu_custom_call.1} parent=0 // pred_region
    _
  $region17: #{tpu_custom_call.1} parent=0 // pred_fallthru
    _
  // Predicated region
  $region18: #{tpu_custom_call.1} parent=0 // pred_check
    _
  $region19: #{tpu_custom_call.1} parent=0 // pred_check_branch
    %519 = sbr.rel (0) target = $region21
  $region20: #{tpu_custom_call.1} parent=0 // pred_region
    _
  $region21: #{tpu_custom_call.1} parent=0 // pred_fallthru
    _
  // Predicated region
  $region22: #{tpu_custom_call.1} parent=0 // pred_check
    _
  $region23: #{tpu_custom_call.1} parent=0 // pred_check_branch
    %521 = sbr.rel (0) target = $region25
  $region24: #{tpu_custom_call.1} parent=0 // pred_region
    _
  $region25: #{tpu_custom_call.1} parent=0 // pred_fallthru
    _

</llo_original>
